<compile_context>
chip_gen: v7x
topology: tpu7x:2x2x1
jax: 0.10.0
libtpu: 0.0.40
codegen_flags: <defaults>
</compile_context>

<pallas_src>
import math

import jax
import jax.numpy as jnp
from jax.experimental import pallas as pl
from jax.experimental.pallas import tpu as pltpu


def _round_up(n, m):
    return ((n + m - 1) // m) * m


# Beyond this sequence length, folding mean(dim=1) into an S-fold replicated W1
# (S-fold extra MXU flops + S*D_in*H weight footprint) loses to an in-kernel mean.
_MEAN_FOLD_MAX_SEQ = 16


def dan_kernel_meanfolded(x_ref, w1_ref, b1_ref, w2_ref, b2_ref, o_ref):
    """x_ref: (block_b, S*D_in) bf16; mean(dim=1) + BN1 + fc1 folded into w1/b1."""
    h = jnp.dot(x_ref[...], w1_ref[...], preferred_element_type=jnp.float32) + b1_ref[...]
    # TODO(synk): Dropout(p=0.1) layers are identity under eval(); a training
    # path would need pltpu.prng_seed/prng_random_bits masking.
    o_ref[...] = (jnp.dot(h.astype(jnp.bfloat16), w2_ref[...],
                          preferred_element_type=jnp.float32) + b2_ref[...])


def dan_kernel_inmean(x_ref, w1_ref, b1_ref, w2_ref, b2_ref, o_ref):
    """x_ref: (block_b, S, D_in) bf16; mean(dim=1) computed in-kernel, BN folded."""
    xm = jnp.mean(x_ref[...].astype(jnp.float32), axis=1)          # (block_b, D_in) f32
    h = jnp.dot(xm.astype(jnp.bfloat16), w1_ref[...],
                preferred_element_type=jnp.float32) + b1_ref[...]
    o_ref[...] = (jnp.dot(h.astype(jnp.bfloat16), w2_ref[...],
                          preferred_element_type=jnp.float32) + b2_ref[...])


def fold_dan_params(S, w1, b1, g1, bt1, m1, v1, w2, b2, g2, bt2, m2, v2,
                    eps=1e-5, fold_mean=None):
    """One-time host-side parameter transform (not a per-call wrapper op).

    w1: (H, D_in) = fc1.weight, w2: (R, H) = fc2.weight (PyTorch layout).
    Returns lane-dense (128-padded) bf16 weights / f32 biases:
      w1_f: (S*D_in, H_pad) bf16 if fold_mean (mean+BN1 folded), else (D_in, H_pad)
      b1_f: (1, H_pad) f32,  w2_f: (H_pad, R_pad) bf16,  b2_f: (1, R_pad) f32
    """
    D_in, H, R = w1.shape[1], w1.shape[0], w2.shape[0]
    H_pad = _round_up(H, 128)
    R_pad = _round_up(R, 128)
    if fold_mean is None:
        fold_mean = S <= _MEAN_FOLD_MAX_SEQ

    # TODO(synk): eval-mode BatchNorm only (running stats folded); training-mode
    # batch statistics would need a cross-batch-block reduction.
    s1 = g1 * jax.lax.rsqrt(v1 + eps)                    # (D_in,)
    w1_f = s1[:, None] * w1.T                            # (D_in, H)
    b1_f = b1 + (bt1 - m1 * s1) @ w1.T                   # (H,)

    s2 = g2 * jax.lax.rsqrt(v2 + eps)                    # (H,)
    w2_f = s2[:, None] * w2.T                            # (H, R)
    b2_f = b2 + (bt2 - m2 * s2) @ w2.T                   # (R,)

    if fold_mean:
        # x.reshape(B, S*D_in) @ tile(w1_f/S, (S,1)) == mean(x,1) @ w1_f (exact).
        w1_f = jnp.tile(w1_f / S, (S, 1))                # (S*D_in, H)

    w1_f = jnp.pad(w1_f, ((0, 0), (0, H_pad - H))).astype(jnp.bfloat16)
    b1_f = jnp.pad(b1_f, (0, H_pad - H)).reshape(1, H_pad).astype(jnp.float32)
    w2_f = jnp.pad(w2_f, ((0, H_pad - H), (0, R_pad - R))).astype(jnp.bfloat16)
    b2_f = jnp.pad(b2_f, (0, R_pad - R)).reshape(1, R_pad).astype(jnp.float32)
    return w1_f, b1_f, w2_f, b2_f


def _default_vmem_budget_bytes():
    # ~75% of this core's VMEM: ~96 MiB on v5e/v6e (128 MiB physical), ~48 MiB
    # on a v7x TensorCore (64 MiB). Conservative 48 MiB plan if query fails.
    try:
        cap = int(pltpu.get_tpu_info().vmem_capacity_bytes)
    except Exception:
        cap = 64 << 20
    return max(16 << 20, cap * 3 // 4)


def dan_forward(x, w1_f, b1_f, w2_f, b2_f, r, *, block_b=None, vmem_budget_bytes=None):
    """x: (B, S, D_in).  Returns (B, r) float32."""
    B, S, D_in = x.shape
    H_pad = w1_f.shape[1]
    R_pad = w2_f.shape[1]
    assert w1_f.shape[0] in (S * D_in, D_in)
    assert w2_f.shape[0] == H_pad
    fold_mean = (w1_f.shape[0] == S * D_in)
    K_w = w1_f.shape[0]

    # bf16 operands, f32 accumulation. Ideally the producer already hands x
    # over in bf16; this cast is only a fallback.
    if x.dtype != jnp.bfloat16:
        x = x.astype(jnp.bfloat16)

    if vmem_budget_bytes is None:
        vmem_budget_bytes = _default_vmem_budget_bytes()

    # VMEM plan: double-buffered x/out tiles, single-buffered weights/biases
    # (pl.Buffered(1), grid-invariant), plus the h / xm temporaries.
    x_row_bytes = S * D_in * 2
    row_bytes = (2 * x_row_bytes                       # x tile (2 buffers, bf16)
                 + 2 * R_pad * 4                       # out tile (2 buffers, f32)
                 + H_pad * 4                           # h intermediate
                 + (0 if fold_mean else D_in * 4))     # xm intermediate
    weight_bytes = (K_w * H_pad + H_pad * R_pad) * 2 + (H_pad + R_pad) * 4
    # TODO(synk): add N/K weight tiling if weight_bytes itself approaches VMEM.

    if block_b is None:
        avail = vmem_budget_bytes - weight_bytes - (4 << 20)   # compiler-scratch slack
        cap = max(16, (avail // row_bytes) // 16 * 16) if avail > row_bytes * 16 else 16
        block_b = min(_round_up(B, 16), cap)
        if B >= 32:
            # Keep >=2 grid steps so the "parallel" batch axis can be split
            # across v7x's two TensorCores.
            block_b = min(block_b, _round_up(pl.cdiv(B, 2), 16))
        if block_b > B:
            block_b = _round_up(B, 8)                  # tiny batch: one exact block

    grid = (pl.cdiv(B, block_b),)                      # ragged last block; no x pad copy

    if fold_mean:
        kernel = dan_kernel_meanfolded
        x_in = x.reshape(B, S * D_in)                  # row-major merge, no data movement
        x_spec = pl.BlockSpec((block_b, S * D_in), lambda i: (i, 0))
    else:
        kernel = dan_kernel_inmean
        x_in = x
        x_spec = pl.BlockSpec((block_b, S, D_in), lambda i: (i, 0, 0))

    const = dict(pipeline_mode=pl.Buffered(1))         # invariant operands: single buffer
    flops = 2 * B * (K_w * H_pad + H_pad * R_pad)
    bytes_accessed = B * x_row_bytes + weight_bytes + B * R_pad * 4

    out = pl.pallas_call(
        kernel,
        out_shape=jax.ShapeDtypeStruct((B, R_pad), jnp.float32),
        grid_spec=pltpu.PrefetchScalarGridSpec(
            num_scalar_prefetch=0,
            grid=grid,
            in_specs=[
                x_spec,
                pl.BlockSpec((K_w, H_pad), lambda i: (0, 0), **const),   # W1 (BN1[, mean] folded)
                pl.BlockSpec((1, H_pad), lambda i: (0, 0), **const),     # b1 folded
                pl.BlockSpec((H_pad, R_pad), lambda i: (0, 0), **const), # W2 (BN2 folded)
                pl.BlockSpec((1, R_pad), lambda i: (0, 0), **const),     # b2 folded
            ],
            out_specs=pl.BlockSpec((block_b, R_pad), lambda i: (i, 0)),
        ),
        compiler_params=pltpu.CompilerParams(
            # Batch blocks are independent -> shard across TCs on v7x.
            dimension_semantics=("parallel",),
            vmem_limit_bytes=int(min(vmem_budget_bytes, 128 << 20)),
        ),
        cost_estimate=pl.CostEstimate(
            flops=flops, bytes_accessed=bytes_accessed, transcendentals=0),
    )(x_in, w1_f, b1_f, w2_f, b2_f)
    return out[:, :r]


def dan_reference(x, w1, b1, g1, bt1, m1, v1, w2, b2, g2, bt2, m2, v2, eps=1e-5):
    """Pure-JAX eval-mode DAN forward (dropout = identity)."""
    xm = x.mean(axis=1)
    h = (xm - m1) * jax.lax.rsqrt(v1 + eps) * g1 + bt1
    h = h @ w1.T + b1
    h = (h - m2) * jax.lax.rsqrt(v2 + eps) * g2 + bt2
    return h @ w2.T + b2


if __name__ == "__main__":
    # Small shapes consistent with DAN(input_dim=32, hidden=64, r=16), x:(B,S,D_in).
    B, D_in, hidden, r = 8, 32, 64, 16
    eps = 1e-5

    key = jax.random.PRNGKey(0)
    keys = jax.random.split(key, 14)

    # Deterministic synthetic params matching PyTorch shapes.
    bound1 = 1.0 / math.sqrt(D_in)
    w1 = jax.random.uniform(keys[1], (hidden, D_in), jnp.float32, -bound1, bound1)
    b1 = jax.random.uniform(keys[2], (hidden,), jnp.float32, -bound1, bound1)
    bound2 = 1.0 / math.sqrt(hidden)
    w2 = jax.random.uniform(keys[3], (r, hidden), jnp.float32, -bound2, bound2)
    b2 = jax.random.uniform(keys[4], (r,), jnp.float32, -bound2, bound2)

    g1 = 1.0 + 0.1 * jax.random.normal(keys[5], (D_in,), jnp.float32)
    bt1 = 0.1 * jax.random.normal(keys[6], (D_in,), jnp.float32)
    m1 = 0.1 * jax.random.normal(keys[7], (D_in,), jnp.float32)
    v1 = jnp.abs(jax.random.normal(keys[8], (D_in,), jnp.float32)) + 0.5

    g2 = 1.0 + 0.1 * jax.random.normal(keys[9], (hidden,), jnp.float32)
    bt2 = 0.1 * jax.random.normal(keys[10], (hidden,), jnp.float32)
    m2 = 0.1 * jax.random.normal(keys[11], (hidden,), jnp.float32)
    v2 = jnp.abs(jax.random.normal(keys[12], (hidden,), jnp.float32)) + 0.5

    bn_lin = (w1, b1, g1, bt1, m1, v1, w2, b2, g2, bt2, m2, v2)

    # S=8 exercises the mean-folded-into-W1 path; S=64 the in-kernel-mean path.
    for S, xkey in ((8, keys[0]), (64, keys[13])):
        x = jax.random.normal(xkey, (B, S, D_in), dtype=jnp.float32)
        params = fold_dan_params(S, *bn_lin, eps=eps)
        out = jax.block_until_ready(dan_forward(x, *params, r))
        ref = dan_reference(x, *bn_lin, eps=eps)
        assert out.shape == (B, r), out.shape
        # bf16 operands / f32 accumulation -> relaxed tolerance vs f32 reference.
        err = float(jnp.max(jnp.abs(out - ref)))
        assert jnp.allclose(out, ref, atol=5e-2, rtol=5e-2), err

    print("KERNEL_OK")
</pallas_src>

<mosaic_0001>
module attributes {stable_mosaic.version = 11 : i64} {
  func.func @dan_kernel_meanfolded(%arg0: i32, %arg1: memref<8x256xbf16, #tpu.memory_space<vmem>>, %arg2: memref<256x128xbf16, #tpu.memory_space<vmem>>, %arg3: memref<1x128xf32, #tpu.memory_space<vmem>>, %arg4: memref<128x128xbf16, #tpu.memory_space<vmem>>, %arg5: memref<1x128xf32, #tpu.memory_space<vmem>>, %arg6: memref<8x128xf32, #tpu.memory_space<vmem>>) attributes {dimension_semantics = [#tpu.dimension_semantics<parallel>], iteration_bounds = array<i64: 1>, scalar_prefetch = 0 : i64, scratch_operands = 0 : i64, tpu.core_type = #tpu.core_type<tc>, window_params = [{transform_indices = @transform_0, window_bounds = array<i64: 8, 256>}, {pipeline_mode = #tpu.pipeline_mode<synchronous>, transform_indices = @transform_1, window_bounds = array<i64: 256, 128>}, {pipeline_mode = #tpu.pipeline_mode<synchronous>, transform_indices = @transform_2, window_bounds = array<i64: 1, 128>}, {pipeline_mode = #tpu.pipeline_mode<synchronous>, transform_indices = @transform_3, window_bounds = array<i64: 128, 128>}, {pipeline_mode = #tpu.pipeline_mode<synchronous>, transform_indices = @transform_4, window_bounds = array<i64: 1, 128>}, {transform_indices = @transform_5, window_bounds = array<i64: 8, 128>}]} {
    %c0 = arith.constant 0 : index
    %c0_0 = arith.constant 0 : index
    %0 = vector.load %arg1[%c0, %c0_0] : memref<8x256xbf16, #tpu.memory_space<vmem>>, vector<8x256xbf16>
    %c0_1 = arith.constant 0 : index
    %c0_2 = arith.constant 0 : index
    %1 = vector.load %arg2[%c0_1, %c0_2] : memref<256x128xbf16, #tpu.memory_space<vmem>>, vector<256x128xbf16>
    %cst = arith.constant dense<0.000000e+00> : vector<8x128xf32>
    %2 = tpu.matmul %0, %1, %cst {dimension_numbers = #tpu.dot_dimension_numbers<[1], [0], [0], [1], [0, 0, 1, 1], [], []>} : vector<8x256xbf16>, vector<256x128xbf16>, vector<8x128xf32> -> vector<8x128xf32>
    %c0_3 = arith.constant 0 : index
    %c0_4 = arith.constant 0 : index
    %3 = vector.load %arg3[%c0_3, %c0_4] : memref<1x128xf32, #tpu.memory_space<vmem>>, vector<1x128xf32>
    %4 = vector.broadcast %3 : vector<1x128xf32> to vector<8x128xf32>
    %5 = arith.addf %2, %4 : vector<8x128xf32>
    %6 = arith.truncf %5 : vector<8x128xf32> to vector<8x128xbf16>
    %c0_5 = arith.constant 0 : index
    %c0_6 = arith.constant 0 : index
    %7 = vector.load %arg4[%c0_5, %c0_6] : memref<128x128xbf16, #tpu.memory_space<vmem>>, vector<128x128xbf16>
    %cst_7 = arith.constant dense<0.000000e+00> : vector<8x128xf32>
    %8 = tpu.matmul %6, %7, %cst_7 {dimension_numbers = #tpu.dot_dimension_numbers<[1], [0], [0], [1], [0, 0, 1, 1], [], []>} : vector<8x128xbf16>, vector<128x128xbf16>, vector<8x128xf32> -> vector<8x128xf32>
    %c0_8 = arith.constant 0 : index
    %c0_9 = arith.constant 0 : index
    %9 = vector.load %arg5[%c0_8, %c0_9] : memref<1x128xf32, #tpu.memory_space<vmem>>, vector<1x128xf32>
    %10 = vector.broadcast %9 : vector<1x128xf32> to vector<8x128xf32>
    %11 = arith.addf %8, %10 : vector<8x128xf32>
    %c0_10 = arith.constant 0 : index
    %c0_11 = arith.constant 0 : index
    %12 = vector.load %arg6[%c0_10, %c0_11] : memref<8x128xf32, #tpu.memory_space<vmem>>, vector<8x128xf32>
    tpu.vector_store %arg6[%c0_10, %c0_11], %11 {strides = array<i32>} : memref<8x128xf32, #tpu.memory_space<vmem>>, vector<8x128xf32>,
    return
  }
  func.func @transform_0(%arg0: i32) -> (i32, i32) {
    %c0_i32 = arith.constant 0 : i32
    %c0_i32_0 = arith.constant 0 : i32
    return %arg0, %c0_i32 : i32, i32
  }
  func.func @transform_1(%arg0: i32) -> (i32, i32) {
    %c0_i32 = arith.constant 0 : i32
    %c0_i32_0 = arith.constant 0 : i32
    %c0_i32_1 = arith.constant 0 : i32
    return %c0_i32, %c0_i32_0 : i32, i32
  }
  func.func @transform_2(%arg0: i32) -> (i32, i32) {
    %c0_i32 = arith.constant 0 : i32
    %c0_i32_0 = arith.constant 0 : i32
    %c0_i32_1 = arith.constant 0 : i32
    return %c0_i32, %c0_i32_0 : i32, i32
  }
  func.func @transform_3(%arg0: i32) -> (i32, i32) {
    %c0_i32 = arith.constant 0 : i32
    %c0_i32_0 = arith.constant 0 : i32
    %c0_i32_1 = arith.constant 0 : i32
    return %c0_i32, %c0_i32_0 : i32, i32
  }
  func.func @transform_4(%arg0: i32) -> (i32, i32) {
    %c0_i32 = arith.constant 0 : i32
    %c0_i32_0 = arith.constant 0 : i32
    %c0_i32_1 = arith.constant 0 : i32
    return %c0_i32, %c0_i32_0 : i32, i32
  }
  func.func @transform_5(%arg0: i32) -> (i32, i32) {
    %c0_i32 = arith.constant 0 : i32
    %c0_i32_0 = arith.constant 0 : i32
    return %arg0, %c0_i32 : i32, i32
  }
}

</mosaic_0001>

<llo_original>
// kernel: tpu_custom_call.1
$region0: #{tpu_custom_call.1}
  #allocation0 [shape = 'u32[]', space=smem, size = 0x4, offset = 0x4, fixed_abs, tag = 'smem constant byte address 0x4 - core index']
  #allocation1 [shape = 'u32[144,128]{1,0:T(1,128)}', space=vmem, size = 0x12000, scoped, tag = 'internal scratch']
  %s0 = inlined_call_operand.hbm [shape: bf16[8,256], index: 0, kind: input, shape index: {}]
  %s1 = inlined_call_operand.hbm [shape: bf16[256,128], index: 1, kind: input, shape index: {}]
  %s2 = inlined_call_operand.vmem [shape: f32[1,128], index: 2, kind: input, shape index: {}]
  %s3 = inlined_call_operand.hbm [shape: bf16[128,128], index: 3, kind: input, shape index: {}]
  %s4 = inlined_call_operand.vmem [shape: f32[1,128], index: 4, kind: input, shape index: {}]
  %s5 = inlined_call_operand.hbm [shape: f32[8,128], index: 5, kind: output, shape index: {}]
  %s6 = sld [smem:[#allocation0]]
  $region42: #{tpu_custom_call.1} parent=0
    _
  %s8 = ssub.s32 1, %s6
  %s9 = scalar_select 0, %s8, %s6
  $region1: #{tpu_custom_call.1} parent=0
    #allocation2 [shape = 'u8[4096]{0}', space=vmem, size = 0x1000, scoped, tag = 'input window, operand 0, single buffered']
    #allocation3 [shape = 's32[1]{0}', space=sflag, size = 0x4, scoped, tag = 'scoped memory for tpu_custom_call.1']
    #allocation4 [shape = 's32[1]{0}', space=sflag, size = 0x4, scoped, tag = 'scoped memory for tpu_custom_call.1']
    #allocation5 [shape = 'u8[65536]{0}', space=vmem, size = 0x10000, scoped, tag = 'input window, operand 1, single buffered']
    #allocation6 [shape = 's32[1]{0}', space=sflag, size = 0x4, scoped, tag = 'scoped memory for tpu_custom_call.1']
    #allocation7 [shape = 'u8[32768]{0}', space=vmem, size = 0x8000, scoped, tag = 'input window, operand 3, single buffered']
    #allocation8 [shape = 'u8[4096]{0}', space=vmem, size = 0x1000, scoped, tag = 'output window, operand 0, single buffered']
    %10 = vsyncpa [#allocation3], 0
    %11 = vsyncpa [#allocation6], 0
    %12 = vsyncpa [#allocation4], 0
    // Predicated region
    $region2: #{tpu_custom_call.1} parent=1 // pred_check
      _
    $region3: #{tpu_custom_call.1} parent=1 // pred_check_branch
      %14 = sbr.rel (0) target = $region5
    $region4: #{tpu_custom_call.1} parent=1 // pred_region
      %s16 = ssub.s32 128, 128
      %17 = vsyncadd [#allocation3], %s16
      %s19 = sshll.u32 [#allocation2], 4
      %s20 = int_to_ptr.vmem [resolvable:$true] %s19
      %22 = dma.hbm_to_vmem [thread:$0]  %s0, 128, %s20, [#allocation3]
    $region5: #{tpu_custom_call.1} parent=1 // pred_fallthru
      _
    // Predicated region
    $region6: #{tpu_custom_call.1} parent=1 // pred_check
      _
    $region7: #{tpu_custom_call.1} parent=1 // pred_check_branch
      %24 = sbr.rel (0) target = $region9
    $region8: #{tpu_custom_call.1} parent=1 // pred_region
      %s26 = ssub.s32 2048, 2048
      %27 = vsyncadd [#allocation6], %s26
      %s28 = sshll.u32 [#allocation5], 4
      %s29 = int_to_ptr.vmem [resolvable:$true] %s28
      %34 = dma.hbm_to_vmem [thread:$0]  %s1, 2048, %s29, [#allocation6], 64, 64, 4
    $region9: #{tpu_custom_call.1} parent=1 // pred_fallthru
      _
    // Predicated region
    $region10: #{tpu_custom_call.1} parent=1 // pred_check
      _
    $region11: #{tpu_custom_call.1} parent=1 // pred_check_branch
      %36 = sbr.rel (0) target = $region13
    $region12: #{tpu_custom_call.1} parent=1 // pred_region
      _
    $region13: #{tpu_custom_call.1} parent=1 // pred_fallthru
      _
    // Predicated region
    $region14: #{tpu_custom_call.1} parent=1 // pred_check
      _
    $region15: #{tpu_custom_call.1} parent=1 // pred_check_branch
      %38 = sbr.rel (0) target = $region17
    $region16: #{tpu_custom_call.1} parent=1 // pred_region
      %s40 = ssub.s32 1024, 1024
      %41 = vsyncadd [#allocation6], %s40
      %s42 = sshll.u32 [#allocation7], 4
      %s43 = int_to_ptr.vmem [resolvable:$true] %s42
      %48 = dma.hbm_to_vmem [thread:$0]  %s3, 1024, %s43, [#allocation6], 64, 64, 4
    $region17: #{tpu_custom_call.1} parent=1 // pred_fallthru
      _
    // Predicated region
    $region18: #{tpu_custom_call.1} parent=1 // pred_check
      _
    $region19: #{tpu_custom_call.1} parent=1 // pred_check_branch
      %50 = sbr.rel (0) target = $region21
    $region20: #{tpu_custom_call.1} parent=1 // pred_region
      _
    $region21: #{tpu_custom_call.1} parent=1 // pred_fallthru
      _
    // Predicated region
    $region22: #{tpu_custom_call.1} parent=1 // pred_check
      _
    $region23: #{tpu_custom_call.1} parent=1 // pred_check_branch
      %52 = sbr.rel (0) target = $region25
    $region24: #{tpu_custom_call.1} parent=1 // pred_region
      %53 = dma.done [#allocation3], 128
    $region25: #{tpu_custom_call.1} parent=1 // pred_fallthru
      _
    // Predicated region
    $region26: #{tpu_custom_call.1} parent=1 // pred_check
      _
    $region27: #{tpu_custom_call.1} parent=1 // pred_check_branch
      %55 = sbr.rel (0) target = $region29
    $region28: #{tpu_custom_call.1} parent=1 // pred_region
      %56 = dma.done [#allocation6], 2048
    $region29: #{tpu_custom_call.1} parent=1 // pred_fallthru
      _
    // Predicated region
    $region30: #{tpu_custom_call.1} parent=1 // pred_check
      _
    $region31: #{tpu_custom_call.1} parent=1 // pred_check_branch
      %58 = sbr.rel (0) target = $region33
    $region32: #{tpu_custom_call.1} parent=1 // pred_region
      %59 = dma.done [#allocation6], 1024
    $region33: #{tpu_custom_call.1} parent=1 // pred_fallthru
      _
    %v61 = vld [vmem:[#allocation2] sm:$0xff]
    %v62 = vld [vmem:[#allocation5] sm:$0xf]
    %v63 = vld [vmem:[#allocation5 + $0x4] sm:$0xf]
    %v64 = vld [vmem:[#allocation5 + $0x8] sm:$0xf]
    %v65 = vld [vmem:[#allocation5 + $0xc] sm:$0xf]
    %v66 = vld [vmem:[#allocation5 + $0x10] sm:$0xf]
    %v67 = vld [vmem:[#allocation5 + $0x14] sm:$0xf]
    %v68 = vld [vmem:[#allocation5 + $0x18] sm:$0xf]
    %v69 = vld [vmem:[#allocation5 + $0x1c] sm:$0xf]
    %v70 = vld [vmem:[#allocation5 + $0x20] sm:$0xf]
    %v71 = vld [vmem:[#allocation5 + $0x24] sm:$0xf]
    %v72 = vld [vmem:[#allocation5 + $0x28] sm:$0xf]
    %v73 = vld [vmem:[#allocation5 + $0x2c] sm:$0xf]
    %v74 = vld [vmem:[#allocation5 + $0x30] sm:$0xf]
    %v75 = vld [vmem:[#allocation5 + $0x34] sm:$0xf]
    %v76 = vld [vmem:[#allocation5 + $0x38] sm:$0xf]
    %v77 = vld [vmem:[#allocation5 + $0x3c] sm:$0xf]
    %v78 = vld [vmem:[#allocation5 + $0x40] sm:$0xf]
    %v79 = vld [vmem:[#allocation5 + $0x44] sm:$0xf]
    %v80 = vld [vmem:[#allocation5 + $0x48] sm:$0xf]
    %v81 = vld [vmem:[#allocation5 + $0x4c] sm:$0xf]
    %v82 = vld [vmem:[#allocation5 + $0x50] sm:$0xf]
    %v83 = vld [vmem:[#allocation5 + $0x54] sm:$0xf]
    %v84 = vld [vmem:[#allocation5 + $0x58] sm:$0xf]
    %v85 = vld [vmem:[#allocation5 + $0x5c] sm:$0xf]
    %v86 = vld [vmem:[#allocation5 + $0x60] sm:$0xf]
    %v87 = vld [vmem:[#allocation5 + $0x64] sm:$0xf]
    %v88 = vld [vmem:[#allocation5 + $0x68] sm:$0xf]
    %v89 = vld [vmem:[#allocation5 + $0x6c] sm:$0xf]
    %v90 = vld [vmem:[#allocation5 + $0x70] sm:$0xf]
    %v91 = vld [vmem:[#allocation5 + $0x74] sm:$0xf]
    %v92 = vld [vmem:[#allocation5 + $0x78] sm:$0xf]
    %v93 = vld [vmem:[#allocation5 + $0x7c] sm:$0xf]
    %v94 = vld [vmem:[%s2] sm:$0x1]
    %v96 = vlaneseq
    %v97 = vshrl.u32 %v96, 7
    %v98 = vsub.s32 0, %v97
    %v99 = vrot.slane %v94, %v98
    %v102 = vunpack.c.l.b16 %v61
    %v103 = vunpack.c.h.b16 %v61
    %v104 = vpack.c.b16 %v102, %v102
    %v105 = vpack.c.b16 %v103, %v103
    %v140 = vunpack.c.l.b16 %v62
    %v141 = vunpack.c.l.b16 %v63
    %v142 = vunpack.c.l.b16 %v64
    %v143 = vunpack.c.l.b16 %v65
    %v144 = vunpack.c.l.b16 %v66
    %v145 = vunpack.c.l.b16 %v67
    %v146 = vunpack.c.l.b16 %v68
    %v147 = vunpack.c.l.b16 %v69
    %v148 = vunpack.c.l.b16 %v70
    %v149 = vunpack.c.l.b16 %v71
    %v150 = vunpack.c.l.b16 %v72
    %v151 = vunpack.c.l.b16 %v73
    %v152 = vunpack.c.l.b16 %v74
    %v153 = vunpack.c.l.b16 %v75
    %v154 = vunpack.c.l.b16 %v76
    %v155 = vunpack.c.l.b16 %v77
    %v156 = vunpack.c.l.b16 %v78
    %v157 = vunpack.c.l.b16 %v79
    %v158 = vunpack.c.l.b16 %v80
    %v159 = vunpack.c.l.b16 %v81
    %v160 = vunpack.c.l.b16 %v82
    %v161 = vunpack.c.l.b16 %v83
    %v162 = vunpack.c.l.b16 %v84
    %v163 = vunpack.c.l.b16 %v85
    %v164 = vunpack.c.l.b16 %v86
    %v165 = vunpack.c.l.b16 %v87
    %v166 = vunpack.c.l.b16 %v88
    %v167 = vunpack.c.l.b16 %v89
    %v168 = vunpack.c.l.b16 %v90
    %v169 = vunpack.c.l.b16 %v91
    %v170 = vunpack.c.l.b16 %v92
    %v171 = vunpack.c.l.b16 %v93
    %v172 = vpack.c.b16 %v141, %v140
    %v173 = vpack.c.b16 %v143, %v142
    %v174 = vpack.c.b16 %v145, %v144
    %v175 = vpack.c.b16 %v147, %v146
    %v176 = vpack.c.b16 %v149, %v148
    %v177 = vpack.c.b16 %v151, %v150
    %v178 = vpack.c.b16 %v153, %v152
    %v179 = vpack.c.b16 %v155, %v154
    %v180 = vpack.c.b16 %v157, %v156
    %v181 = vpack.c.b16 %v159, %v158
    %v182 = vpack.c.b16 %v161, %v160
    %v183 = vpack.c.b16 %v163, %v162
    %v184 = vpack.c.b16 %v165, %v164
    %v185 = vpack.c.b16 %v167, %v166
    %v186 = vpack.c.b16 %v169, %v168
    %v187 = vpack.c.b16 %v171, %v170
    %204 = vmatprep.subr.bf16.mxu0 0
    %205 = vmatpush1.bf16.msra.mxu0 %v172
    %206 = vmatprep.subr.bf16.mxu0 0
    %207 = vmatpush1.bf16.msra.mxu0 %v173
    %208 = vmatprep.subr.bf16.mxu0 0
    %209 = vmatpush1.bf16.msra.mxu0 %v174
    %210 = vmatprep.subr.bf16.mxu0 0
    %211 = vmatpush1.bf16.msra.mxu0 %v175
    %212 = vmatprep.subr.bf16.mxu0 0
    %213 = vmatpush1.bf16.msra.mxu0 %v176
    %214 = vmatprep.subr.bf16.mxu0 0
    %215 = vmatpush1.bf16.msra.mxu0 %v177
    %216 = vmatprep.subr.bf16.mxu0 0
    %217 = vmatpush1.bf16.msra.mxu0 %v178
    %218 = vmatprep.subr.bf16.mxu0 0
    %219 = vmatpush1.bf16.msra.mxu0 %v179
    %220 = vmatprep.subr.bf16.mxu0 0
    %221 = vmatpush1.bf16.msra.mxu0 %v180
    %222 = vmatprep.subr.bf16.mxu0 0
    %223 = vmatpush1.bf16.msra.mxu0 %v181
    %224 = vmatprep.subr.bf16.mxu0 0
    %225 = vmatpush1.bf16.msra.mxu0 %v182
    %226 = vmatprep.subr.bf16.mxu0 0
    %227 = vmatpush1.bf16.msra.mxu0 %v183
    %228 = vmatprep.subr.bf16.mxu0 0
    %229 = vmatpush1.bf16.msra.mxu0 %v184
    %230 = vmatprep.subr.bf16.mxu0 0
    %231 = vmatpush1.bf16.msra.mxu0 %v185
    %232 = vmatprep.subr.bf16.mxu0 0
    %233 = vmatpush1.bf16.msra.mxu0 %v186
    %234 = vmatprep.subr.bf16.mxu0 0
    %235 = vmatpush1.bf16.msra.mxu0 %v187
    %236 = vmatprep.mubr.bf16.mxu0 %v105
    %237 = vmatmul.mubr.bf16.gmra.mrb[0].mxu0 %v104
    %v238 = vpop.f32.mrb[0].mxu0
    %v239 = vadd.f32 %v99, %v238
    %v240 = vpop.f32.mrb[0].mxu0
    %v241 = vpop.f32.mrb[0].mxu0
    %v242 = vpop.f32.mrb[0].mxu0
    %243 = vdwg.mxu0
    %v244 = vpack.c.bf16 %v239, %v239
    %v245 = vld [vmem:[#allocation7] sm:$0xf]
    %v246 = vld [vmem:[#allocation7 + $0x4] sm:$0xf]
    %v247 = vld [vmem:[#allocation7 + $0x8] sm:$0xf]
    %v248 = vld [vmem:[#allocation7 + $0xc] sm:$0xf]
    %v249 = vld [vmem:[#allocation7 + $0x10] sm:$0xf]
    %v250 = vld [vmem:[#allocation7 + $0x14] sm:$0xf]
    %v251 = vld [vmem:[#allocation7 + $0x18] sm:$0xf]
    %v252 = vld [vmem:[#allocation7 + $0x1c] sm:$0xf]
    %v253 = vld [vmem:[#allocation7 + $0x20] sm:$0xf]
    %v254 = vld [vmem:[#allocation7 + $0x24] sm:$0xf]
    %v255 = vld [vmem:[#allocation7 + $0x28] sm:$0xf]
    %v256 = vld [vmem:[#allocation7 + $0x2c] sm:$0xf]
    %v257 = vld [vmem:[#allocation7 + $0x30] sm:$0xf]
    %v258 = vld [vmem:[#allocation7 + $0x34] sm:$0xf]
    %v259 = vld [vmem:[#allocation7 + $0x38] sm:$0xf]
    %v260 = vld [vmem:[#allocation7 + $0x3c] sm:$0xf]
    %v261 = vld [vmem:[%s4] sm:$0x1]
    %v263 = vlaneseq
    %v264 = vshrl.u32 %v263, 7
    %v265 = vsub.s32 0, %v264
    %v266 = vrot.slane %v261, %v265
    %v284 = vunpack.c.l.b16 %v245
    %v285 = vunpack.c.l.b16 %v246
    %v286 = vunpack.c.l.b16 %v247
    %v287 = vunpack.c.l.b16 %v248
    %v288 = vunpack.c.l.b16 %v249
    %v289 = vunpack.c.l.b16 %v250
    %v290 = vunpack.c.l.b16 %v251
    %v291 = vunpack.c.l.b16 %v252
    %v292 = vunpack.c.l.b16 %v253
    %v293 = vunpack.c.l.b16 %v254
    %v294 = vunpack.c.l.b16 %v255
    %v295 = vunpack.c.l.b16 %v256
    %v296 = vunpack.c.l.b16 %v257
    %v297 = vunpack.c.l.b16 %v258
    %v298 = vunpack.c.l.b16 %v259
    %v299 = vunpack.c.l.b16 %v260
    %v300 = vpack.c.b16 %v285, %v284
    %v301 = vpack.c.b16 %v287, %v286
    %v302 = vpack.c.b16 %v289, %v288
    %v303 = vpack.c.b16 %v291, %v290
    %v304 = vpack.c.b16 %v293, %v292
    %v305 = vpack.c.b16 %v295, %v294
    %v306 = vpack.c.b16 %v297, %v296
    %v307 = vpack.c.b16 %v299, %v298
    %316 = vmatprep.subr.bf16.mxu0 0
    %317 = vmatpush1.bf16.msra.mxu0 %v300
    %318 = vmatprep.subr.bf16.mxu0 0
    %319 = vmatpush1.bf16.msra.mxu0 %v301
    %320 = vmatprep.subr.bf16.mxu0 0
    %321 = vmatpush1.bf16.msra.mxu0 %v302
    %322 = vmatprep.subr.bf16.mxu0 0
    %323 = vmatpush1.bf16.msra.mxu0 %v303
    %324 = vmatprep.subr.bf16.mxu0 0
    %325 = vmatpush1.bf16.msra.mxu0 %v304
    %326 = vmatprep.subr.bf16.mxu0 0
    %327 = vmatpush1.bf16.msra.mxu0 %v305
    %328 = vmatprep.subr.bf16.mxu0 0
    %329 = vmatpush1.bf16.msra.mxu0 %v306
    %330 = vmatprep.subr.bf16.mxu0 0
    %331 = vmatpush1.bf16.msra.mxu0 %v307
    %332 = vmatprep.subr.bf16.mxu0 0
    %333 = vmatpush1.bf16.msra.mxu0 0
    %334 = vmatprep.subr.bf16.mxu0 0
    %335 = vmatpush1.bf16.msra.mxu0 0
    %336 = vmatprep.subr.bf16.mxu0 0
    %337 = vmatpush1.bf16.msra.mxu0 0
    %338 = vmatprep.subr.bf16.mxu0 0
    %339 = vmatpush1.bf16.msra.mxu0 0
    %340 = vmatprep.subr.bf16.mxu0 0
    %341 = vmatpush1.bf16.msra.mxu0 0
    %342 = vmatprep.subr.bf16.mxu0 0
    %343 = vmatpush1.bf16.msra.mxu0 0
    %344 = vmatprep.subr.bf16.mxu0 0
    %345 = vmatpush1.bf16.msra.mxu0 0
    %346 = vmatprep.subr.bf16.mxu0 0
    %347 = vmatpush1.bf16.msra.mxu0 0
    %348 = vmatprep.mubr.bf16.mxu0 0
    %349 = vmatmul.mubr.bf16.gmra.mrb[0].mxu0 %v244
    %v350 = vpop.f32.mrb[0].mxu0
    %v351 = vadd.f32 %v266, %v350
    %v352 = vpop.f32.mrb[0].mxu0
    %v353 = vpop.f32.mrb[0].mxu0
    %v354 = vpop.f32.mrb[0].mxu0
    %355 = vdwg.mxu0
    %356 = vst [vmem:[#allocation8] sm:$0xff] %v351
    // Predicated region
    $region34: #{tpu_custom_call.1} parent=1 // pred_check
      _
    $region35: #{tpu_custom_call.1} parent=1 // pred_check_branch
      %358 = sbr.rel (0) target = $region37
    $region36: #{tpu_custom_call.1} parent=1 // pred_region
      %s360 = ssub.s32 128, 128
      %361 = vsyncadd [#allocation4], %s360
      %s363 = sshll.u32 [#allocation8], 4
      %s364 = int_to_ptr.vmem [resolvable:$true] %s363
      %366 = dma.vmem_to_hbm [thread:$0]  %s364, 128, %s5, [#allocation4]
    $region37: #{tpu_custom_call.1} parent=1 // pred_fallthru
      _
    // Predicated region
    $region38: #{tpu_custom_call.1} parent=1 // pred_check
      _
    $region39: #{tpu_custom_call.1} parent=1 // pred_check_branch
      %368 = sbr.rel (0) target = $region41
    $region40: #{tpu_custom_call.1} parent=1 // pred_region
      %369 = dma.done [#allocation4], 128
    $region41: #{tpu_custom_call.1} parent=1 // pred_fallthru
      _
    %370 = vsyncpa [#allocation3], 1
    %371 = vsyncpa [#allocation6], 1
    %372 = vsyncpa [#allocation4], 1

</llo_original>
